<compile_context>
chip_gen: v6e
topology: v6e:2x2x1
jax: 0.10.0
libtpu: 0.0.40
codegen_flags: <defaults>
</compile_context>

<pallas_src>
import jax
import jax.numpy as jnp
from jax.experimental import pallas as pl
from jax.experimental.pallas import tpu as pltpu

# ---------------- config (small, consistent with the module) ----------------
B = 2
C = 32                 # num_feat
H = W = 16
HW = H * W             # 256 -> lane axis, multiple of 128 => dense stores
SQUEEZE = 8            # squeeze_factor
SQ = C // SQUEEZE      # 4


# ------------------------------ Pallas kernel ------------------------------
def _channel_attention_kernel(x_ref, p1_ref, p2_ref, o_ref):
    # x_ref: (C, HW) for ONE batch sample -- channels on sublanes, spatial on lanes.
    # p1_ref: (SQ, C+1) = [w1_scaled | b1]   (w1 already includes the 1/HW factor)
    # p2_ref: (C, SQ+1) = [w2 | b2]
    sq, c1 = p1_ref.shape
    c = c1 - 1

    x = x_ref[...]                                               # (C, HW)
    xf = x.astype(jnp.float32)

    # AdaptiveAvgPool2d(1): the 1/HW factor is folded into w1 offline, so this is a
    # plain lane-axis sum.  Result stays (C, 1): channels remain on sublanes.
    pooled = jnp.sum(xf, axis=-1, keepdims=True)                 # (C, 1)

    # unpack packed params (static slices of the ref views)
    w1 = p1_ref[:, :c]                                           # (SQ, C)
    b1 = p1_ref[:, c:]                                           # (SQ, 1)
    w2 = p2_ref[:, :sq]                                          # (C, SQ)
    b2 = p2_ref[:, sq:]                                          # (C, 1)

    # 1x1 Conv C -> C/sq   (transposed matmul keeps the result channel-on-sublane)
    s = jnp.dot(w1, pooled, preferred_element_type=jnp.float32) + b1   # (SQ, 1)
    s = jnp.maximum(s, 0.0)                                             # ReLU
    # 1x1 Conv C/sq -> C
    s = jnp.dot(w2, s, preferred_element_type=jnp.float32) + b2         # (C, 1)
    s = jax.nn.sigmoid(s)                                                # Sigmoid

    # x * y : per-channel scale broadcasts along the spatial lane axis.
    # Output last dim = HW = 256 -> lane-dense unmasked stores.
    o_ref[...] = (xf * s).astype(o_ref.dtype)


# ------------------------------ wrapper -------------------------------------
def channel_attention(x_nchw, p1, p2):
    """x_nchw: (B, C, H, W); p1: (SQ, C+1) packed [w1/HW | b1]; p2: (C, SQ+1) packed [w2 | b2]."""
    b, c, h, w = x_nchw.shape
    hw = h * w
    sq = p1.shape[0]
    x3 = x_nchw.reshape(b, c, hw)        # contiguous (free) reshape, spatial -> lanes

    out = pl.pallas_call(
        _channel_attention_kernel,
        out_shape=jax.ShapeDtypeStruct((b, c, hw), x_nchw.dtype),
        grid=(b,),
        in_specs=[
            # batch dim squeezed out of the kernel view -> kernel sees (C, HW)
            pl.BlockSpec((None, c, hw), lambda i: (i, 0, 0)),
            # params: same block every step -> fetched once, stays VMEM-resident
            pl.BlockSpec((sq, c + 1), lambda i: (0, 0)),
            pl.BlockSpec((c, sq + 1), lambda i: (0, 0)),
        ],
        out_specs=pl.BlockSpec((None, c, hw), lambda i: (i, 0, 0)),
        compiler_params=pltpu.CompilerParams(
            dimension_semantics=("parallel",)),   # batch across TCs on v7x; pipelined everywhere
    )(x3, p1, p2)
    return out.reshape(b, c, h, w)


def prepare_params(conv1_w, conv1_b, conv2_w, conv2_b, hw):
    """One-time, outside the traced forward:
       * PyTorch 1x1-conv OIHW weights used in their native (out, in) orientation so
         the in-kernel matmuls keep channels on sublanes (no transpose needed at all).
       * 1/HW mean normalization folded into w1.
       * bias appended as an extra column -> 2 packed param arrays instead of 4."""
    w1 = conv1_w[:, :, 0, 0] / hw                     # (SQ, C), includes 1/HW
    b1 = conv1_b.reshape(-1, 1)                       # (SQ, 1)
    w2 = conv2_w[:, :, 0, 0]                          # (C, SQ)
    b2 = conv2_b.reshape(-1, 1)                       # (C, 1)
    p1 = jnp.concatenate([w1, b1], axis=1)            # (SQ, C+1)
    p2 = jnp.concatenate([w2, b2], axis=1)            # (C, SQ+1)
    return p1, p2


# ------------------------------ pure-JAX reference ---------------------------
def channel_attention_reference(x_nchw, conv1_w, conv1_b, conv2_w, conv2_b):
    pooled = x_nchw.mean(axis=(2, 3))                                  # (B, C)
    s = pooled @ jnp.transpose(conv1_w[:, :, 0, 0]) + conv1_b          # (B, SQ)
    s = jnp.maximum(s, 0.0)
    s = s @ jnp.transpose(conv2_w[:, :, 0, 0]) + conv2_b               # (B, C)
    s = jax.nn.sigmoid(s)
    return x_nchw * s[:, :, None, None]


# ------------------------------ main -----------------------------------------
if __name__ == "__main__":
    key = jax.random.PRNGKey(0)
    kx, k1, k2, k3, k4 = jax.random.split(key, 5)

    # deterministic inputs; conv weights in PyTorch Conv2d OIHW layout
    x = jax.random.normal(kx, (B, C, H, W), jnp.float32)
    conv1_w = (jax.random.normal(k1, (SQ, C, 1, 1)) * 0.1).astype(jnp.float32)
    conv1_b = (jax.random.normal(k2, (SQ,)) * 0.1).astype(jnp.float32)
    conv2_w = (jax.random.normal(k3, (C, SQ, 1, 1)) * 0.1).astype(jnp.float32)
    conv2_b = (jax.random.normal(k4, (C,)) * 0.1).astype(jnp.float32)

    # one-time weight prep (outside jit / traced forward)
    p1, p2 = prepare_params(conv1_w, conv1_b, conv2_w, conv2_b, HW)

    fwd = jax.jit(channel_attention)
    out = fwd(x, p1, p2)
    out = jax.block_until_ready(out)

    ref = channel_attention_reference(x, conv1_w, conv1_b, conv2_w, conv2_b)
    assert out.shape == (B, C, H, W)
    assert jnp.allclose(out, ref, rtol=1e-4, atol=1e-4), (
        f"max abs err {jnp.max(jnp.abs(out - ref))}")

    print("KERNEL_OK")
</pallas_src>

<mosaic_0001>
module attributes {stable_mosaic.version = 11 : i64} {
  func.func @_channel_attention_kernel(%arg0: i32, %arg1: memref<1x32x256xf32, #tpu.memory_space<vmem>>, %arg2: memref<4x33xf32, #tpu.memory_space<vmem>>, %arg3: memref<32x5xf32, #tpu.memory_space<vmem>>, %arg4: memref<1x32x256xf32, #tpu.memory_space<vmem>>) attributes {dimension_semantics = [#tpu.dimension_semantics<parallel>], iteration_bounds = array<i64: 2>, scalar_prefetch = 0 : i64, scratch_operands = 0 : i64, tpu.core_type = #tpu.core_type<tc>, window_params = [{transform_indices = @transform_0, window_bounds = array<i64: 1, 32, 256>}, {pipeline_mode = #tpu.pipeline_mode<synchronous>, transform_indices = @transform_1, window_bounds = array<i64: 4, 33>}, {pipeline_mode = #tpu.pipeline_mode<synchronous>, transform_indices = @transform_2, window_bounds = array<i64: 32, 5>}, {transform_indices = @transform_3, window_bounds = array<i64: 1, 32, 256>}]} {
    %c0 = arith.constant 0 : index
    %c0_0 = arith.constant 0 : index
    %c0_1 = arith.constant 0 : index
    %0 = vector.load %arg1[%c0, %c0_0, %c0_1] : memref<1x32x256xf32, #tpu.memory_space<vmem>>, vector<1x32x256xf32>
    %1 = vector.shape_cast %0 : vector<1x32x256xf32> to vector<32x256xf32>
    %cst = arith.constant dense<0.000000e+00> : vector<32xf32>
    %2 = vector.multi_reduction <add>, %1, %cst [1] : vector<32x256xf32> to vector<32xf32>
    %3 = vector.shape_cast %2 : vector<32xf32> to vector<32x1xf32>
    %c0_2 = arith.constant 0 : index
    %c0_3 = arith.constant 0 : index
    %4 = vector.load %arg2[%c0_2, %c0_3] : memref<4x33xf32, #tpu.memory_space<vmem>>, vector<4x32xf32>
    %c0_4 = arith.constant 0 : index
    %c32 = arith.constant 32 : index
    %5 = vector.load %arg2[%c0_4, %c32] : memref<4x33xf32, #tpu.memory_space<vmem>>, vector<4x1xf32>
    %c0_5 = arith.constant 0 : index
    %c0_6 = arith.constant 0 : index
    %6 = vector.load %arg3[%c0_5, %c0_6] : memref<32x5xf32, #tpu.memory_space<vmem>>, vector<32x4xf32>
    %c0_7 = arith.constant 0 : index
    %c4 = arith.constant 4 : index
    %7 = vector.load %arg3[%c0_7, %c4] : memref<32x5xf32, #tpu.memory_space<vmem>>, vector<32x1xf32>
    %cst_8 = arith.constant dense<0.000000e+00> : vector<4x1xf32>
    %8 = tpu.matmul %4, %3, %cst_8 {dimension_numbers = #tpu.dot_dimension_numbers<[1], [0], [0], [1], [0, 0, 1, 1], [], []>} : vector<4x32xf32>, vector<32x1xf32>, vector<4x1xf32> -> vector<4x1xf32>
    %9 = arith.addf %8, %5 : vector<4x1xf32>
    %cst_9 = arith.constant 0.000000e+00 : f32
    %10 = vector.broadcast %cst_9 : f32 to vector<4x1xf32>
    %11 = arith.maximumf %9, %10 : vector<4x1xf32>
    %cst_10 = arith.constant dense<0.000000e+00> : vector<32x1xf32>
    %12 = tpu.matmul %6, %11, %cst_10 {dimension_numbers = #tpu.dot_dimension_numbers<[1], [0], [0], [1], [0, 0, 1, 1], [], []>} : vector<32x4xf32>, vector<4x1xf32>, vector<32x1xf32> -> vector<32x1xf32>
    %13 = arith.addf %12, %7 : vector<32x1xf32>
    %14 = arith.negf %13 : vector<32x1xf32>
    %15 = math.exp %14 : vector<32x1xf32>
    %cst_11 = arith.constant 1.000000e+00 : f32
    %16 = vector.broadcast %cst_11 : f32 to vector<32x1xf32>
    %17 = arith.addf %16, %15 : vector<32x1xf32>
    %18 = arith.divf %16, %17 : vector<32x1xf32>
    %19 = vector.broadcast %18 : vector<32x1xf32> to vector<32x256xf32>
    %20 = arith.mulf %1, %19 : vector<32x256xf32>
    %c0_12 = arith.constant 0 : index
    %c0_13 = arith.constant 0 : index
    %c0_14 = arith.constant 0 : index
    %21 = vector.load %arg4[%c0_12, %c0_13, %c0_14] : memref<1x32x256xf32, #tpu.memory_space<vmem>>, vector<1x32x256xf32>
    %22 = vector.shape_cast %21 : vector<1x32x256xf32> to vector<32x256xf32>
    %23 = vector.shape_cast %20 : vector<32x256xf32> to vector<1x32x256xf32>
    tpu.vector_store %arg4[%c0_12, %c0_13, %c0_14], %23 {strides = array<i32>} : memref<1x32x256xf32, #tpu.memory_space<vmem>>, vector<1x32x256xf32>,
    return
  }
  func.func @transform_0(%arg0: i32) -> (i32, i32, i32) {
    %c0_i32 = arith.constant 0 : i32
    %c0_i32_0 = arith.constant 0 : i32
    %c0_i32_1 = arith.constant 0 : i32
    return %arg0, %c0_i32, %c0_i32_0 : i32, i32, i32
  }
  func.func @transform_1(%arg0: i32) -> (i32, i32) {
    %c0_i32 = arith.constant 0 : i32
    %c0_i32_0 = arith.constant 0 : i32
    %c0_i32_1 = arith.constant 0 : i32
    return %c0_i32, %c0_i32_0 : i32, i32
  }
  func.func @transform_2(%arg0: i32) -> (i32, i32) {
    %c0_i32 = arith.constant 0 : i32
    %c0_i32_0 = arith.constant 0 : i32
    %c0_i32_1 = arith.constant 0 : i32
    return %c0_i32, %c0_i32_0 : i32, i32
  }
  func.func @transform_3(%arg0: i32) -> (i32, i32, i32) {
    %c0_i32 = arith.constant 0 : i32
    %c0_i32_0 = arith.constant 0 : i32
    %c0_i32_1 = arith.constant 0 : i32
    return %arg0, %c0_i32, %c0_i32_0 : i32, i32, i32
  }
}

</mosaic_0001>

<llo_original>
// kernel: channel_attention.1
$region0: #{channel_attention.1}
  #allocation0 [shape = 'u32[]', space=smem, size = 0x4, offset = 0x4, fixed_abs, tag = 'smem constant byte address 0x4 - core index']
  #allocation1 [shape = 'u32[144,128]{1,0:T(1,128)}', space=vmem, size = 0x12000, scoped, tag = 'internal scratch']
  %s0 = inlined_call_operand.vmem [shape: f32[2,32,256], index: 0, kind: input, shape index: {}]
  %s1 = inlined_call_operand.vmem [shape: f32[4,33], index: 1, kind: input, shape index: {}]
  %s2 = inlined_call_operand.vmem [shape: f32[32,5], index: 2, kind: input, shape index: {}]
  %s3 = inlined_call_operand.vmem [shape: f32[2,32,256], index: 3, kind: output, shape index: {}]
  %s4 = sld [smem:[#allocation0]]
  $region45: #{channel_attention.1} parent=0
    _
  %s6 = ssub.s32 1, %s4
  %s7 = scalar_select 0, %s6, %s4
  loop: start=0, step=1, limit=4
  $region2: #{channel_attention.1} parent=0 // loop_pre_header
    _
  $region3: #{channel_attention.1} parent=0 // loop_header
    %s9 = sphi 0, %s13
    %p10 = scmp.ge.s32.totalorder %s9, 4
    %s19 = sphi 0, %s21
    %s22 = sphi 0, %s19
    %s23 = sphi 0, %s22
    %s39 = sphi 0, %s23
    %s43 = sphi 0, %s43
    %s45 = sphi 0, %s43
    %s46 = sphi 0, %s45
    %s60 = sphi 0, %s46
    %s64 = sphi 0, %s64
    %s66 = sphi 0, %s64
    %s67 = sphi 0, %s66
    %s81 = sphi 0, %s67
    %s87 = sphi 0, %s89
    %s90 = sphi 0, %s87
    %s91 = sphi 0, %s90
    %s107 = sphi 0, %s91
  $region4: #{channel_attention.1} parent=0 // loop_header_branch
    %12 = sbr.rel (%p10) target = $region8
  $region5: #{channel_attention.1} parent=0 // loop_body
    %s14 = ssub.s32 %s9, 1
    %s15 = ssub.s32 %s9, 2
    %s16 = sadd.s32 %s9, 1
    %s17 = ssub.s32 %s9, %s16
    %p18 = scmp.eq.s32.totalorder %s17, 0
    %s20 = sadd.s32 %s19, 1
    %s21 = scalar_select %p18, %s19, %s20
    %p24 = pneg %p18
    %p25 = scmp.eq.s32.totalorder %s9, 1
    %p26 = por %p24, %p25
    %p27 = scmp.ne.s32.totalorder %s19, %s22
    %p28 = scmp.eq.s32.totalorder %s9, 0
    %p29 = por %p27, %p28
    %p30 = scmp.ne.s32.totalorder %s19, %s22
    %p31 = scmp.eq.s32.totalorder %s14, 1
    %p32 = por %p30, %p31
    %p33 = scmp.ne.s32.totalorder %s22, %s23
    %p34 = scmp.eq.s32.totalorder %s14, 0
    %p35 = por %p33, %p34
    %p36 = scmp.ne.s32.totalorder %s22, %s23
    %p37 = scmp.eq.s32.totalorder %s15, 1
    %p38 = por %p36, %p37
    %p40 = scmp.ne.s32.totalorder %s23, %s39
    %p41 = scmp.eq.s32.totalorder %s15, 0
    %p42 = por %p40, %p41
    %s44 = sadd.s32 %s43, 1
    %p47 = scmp.eq.s32.totalorder %s9, 1
    %p48 = scmp.ne.s32.totalorder %s43, %s45
    %p49 = scmp.eq.s32.totalorder %s9, 0
    %p50 = por %p48, %p49
    %p51 = scmp.ne.s32.totalorder %s43, %s45
    %p52 = scmp.eq.s32.totalorder %s14, 1
    %p53 = por %p51, %p52
    %p54 = scmp.ne.s32.totalorder %s45, %s46
    %p55 = scmp.eq.s32.totalorder %s14, 0
    %p56 = por %p54, %p55
    %p57 = scmp.ne.s32.totalorder %s45, %s46
    %p58 = scmp.eq.s32.totalorder %s15, 1
    %p59 = por %p57, %p58
    %p61 = scmp.ne.s32.totalorder %s46, %s60
    %p62 = scmp.eq.s32.totalorder %s15, 0
    %p63 = por %p61, %p62
    %s65 = sadd.s32 %s64, 1
    %p68 = scmp.eq.s32.totalorder %s9, 1
    %p69 = scmp.ne.s32.totalorder %s64, %s66
    %p70 = scmp.eq.s32.totalorder %s9, 0
    %p71 = por %p69, %p70
    %p72 = scmp.ne.s32.totalorder %s64, %s66
    %p73 = scmp.eq.s32.totalorder %s14, 1
    %p74 = por %p72, %p73
    %p75 = scmp.ne.s32.totalorder %s66, %s67
    %p76 = scmp.eq.s32.totalorder %s14, 0
    %p77 = por %p75, %p76
    %p78 = scmp.ne.s32.totalorder %s66, %s67
    %p79 = scmp.eq.s32.totalorder %s15, 1
    %p80 = por %p78, %p79
    %p82 = scmp.ne.s32.totalorder %s67, %s81
    %p83 = scmp.eq.s32.totalorder %s15, 0
    %p84 = por %p82, %p83
    %s85 = ssub.s32 %s9, %s16
    %p86 = scmp.eq.s32.totalorder %s85, 0
    %s88 = sadd.s32 %s87, 1
    %s89 = scalar_select %p86, %s87, %s88
    %p92 = pneg %p86
    %p93 = scmp.eq.s32.totalorder %s9, 1
    %p94 = por %p92, %p93
    %p95 = scmp.ne.s32.totalorder %s87, %s90
    %p96 = scmp.eq.s32.totalorder %s9, 0
    %p97 = por %p95, %p96
    %p98 = scmp.ne.s32.totalorder %s87, %s90
    %p99 = scmp.eq.s32.totalorder %s14, 1
    %p100 = por %p98, %p99
    %p101 = scmp.ne.s32.totalorder %s90, %s91
    %p102 = scmp.eq.s32.totalorder %s14, 0
    %p103 = por %p101, %p102
    %p104 = scmp.ne.s32.totalorder %s90, %s91
    %p105 = scmp.eq.s32.totalorder %s15, 1
    %p106 = por %p104, %p105
    %p108 = scmp.ne.s32.totalorder %s91, %s107
    %p109 = scmp.eq.s32.totalorder %s15, 0
    %p110 = por %p108, %p109
    %p111 = scmp.le.s32.totalorder 1, %s9
    %p112 = scmp.lt.s32.totalorder %s9, 3
    %p113 = pnand %p111, %p112
    %p114 = pneg %p113
    // Predicated region
    $region9: #{channel_attention.1} parent=5 // pred_check
      _
    $region10: #{channel_attention.1} parent=5 // pred_check_branch
      %116 = sbr.rel (%p113) target = $region12
    $region11: #{channel_attention.1} parent=5 // pred_region
      %s117 = ssub.s32 %s9, 1
      // Predicated region
      $region13: #{channel_attention.1} parent=11 // pred_check
        %p118 = pneg %p56
      $region14: #{channel_attention.1} parent=11 // pred_check_branch
        %120 = sbr.rel (%p118) target = $region16
      $region15: #{channel_attention.1} parent=11 // pred_region
        _
      $region16: #{channel_attention.1} parent=11 // pred_fallthru
        _
      // Predicated region
      $region17: #{channel_attention.1} parent=11 // pred_check
        %p121 = pneg %p77
      $region18: #{channel_attention.1} parent=11 // pred_check_branch
        %123 = sbr.rel (%p121) target = $region20
      $region19: #{channel_attention.1} parent=11 // pred_region
        _
      $region20: #{channel_attention.1} parent=11 // pred_fallthru
        _
    $region12: #{channel_attention.1} parent=5 // pred_fallthru
      _
    %p124 = scmp.lt.s32.totalorder %s9, 2
    // Predicated region
    $region21: #{channel_attention.1} parent=5 // pred_check
      %p125 = pneg %p124
    $region22: #{channel_attention.1} parent=5 // pred_check_branch
      %127 = sbr.rel (%p125) target = $region24
    $region23: #{channel_attention.1} parent=5 // pred_region
      // Predicated region
      $region25: #{channel_attention.1} parent=23 // pred_check
        %p128 = pneg %p29
      $region26: #{channel_attention.1} parent=23 // pred_check_branch
        %130 = sbr.rel (%p128) target = $region28
      $region27: #{channel_attention.1} parent=23 // pred_region
        %p131 = scmp.lt.s32.totalorder %s9, 1
        %s132 = scalar_select %p131, %s9, 1
        %s133 = smul.addr %s132, 8
        %s134 = smul.addr %s133, 8
        %s135 = scalar_lea.vmem %s0, %s134
      $region28: #{channel_attention.1} parent=23 // pred_fallthru
        _
    $region24: #{channel_attention.1} parent=5 // pred_fallthru
      _
    %p136 = scmp.le.s32.totalorder 1, %s9
    %p137 = scmp.lt.s32.totalorder %s9, 3
    %p138 = pnand %p136, %p137
    %p139 = pneg %p138
    // Predicated region
    $region29: #{channel_attention.1} parent=5 // pred_check
      _
    $region30: #{channel_attention.1} parent=5 // pred_check_branch
      %141 = sbr.rel (%p138) target = $region32
    $region31: #{channel_attention.1} parent=5 // pred_region
      %s142 = ssub.s32 %s9, 1
      %p143 = scmp.lt.s32.totalorder %s14, 1
      %s144 = scalar_select %p143, %s14, 1
      %s145 = smul.addr %s144, 8
      %s146 = smul.addr %s145, 8
      %s147 = scalar_lea.vmem %s0, %s146
      %p148 = pneg %p35
      %p149 = pneg %p32
      %p150 = pneg %p56
      %p151 = pneg %p53
      %p152 = pneg %p77
      %p153 = pneg %p74
      %p154 = pneg %p103
      %p155 = pneg %p100
      %p156 = scmp.lt.s32.totalorder %s14, 1
      %s157 = scalar_select %p156, %s14, 1
      %s158 = smul.addr %s157, 8
      %s159 = smul.addr %s158, 8
      %s160 = scalar_lea.vmem %s3, %s159
      %p161 = scmp.lt.s32.totalorder %s14, 1
      %s162 = scalar_select %p161, %s14, 1
      %s163 = smul.addr %s162, 8
      %s164 = smul.addr %s163, 8
      %s165 = scalar_lea.vmem %s0, %s164
      %p166 = scmp.lt.s32.totalorder %s14, 1
      %s167 = scalar_select %p166, %s14, 1
      %s168 = smul.addr %s167, 8
      %s169 = smul.addr %s168, 8
      %s170 = scalar_lea.vmem %s3, %s169
      %v171 = vld [vmem:[%s165] sm:$0xff]
      %v172 = vld [vmem:[%s165 + $0x8] sm:$0xff]
      %v173 = vld [vmem:[%s165 + $0x10] sm:$0xff]
      %v174 = vld [vmem:[%s165 + $0x18] sm:$0xff]
      %v175 = vld [vmem:[%s165 + $0x20] sm:$0xff]
      %v176 = vld [vmem:[%s165 + $0x28] sm:$0xff]
      %v177 = vld [vmem:[%s165 + $0x30] sm:$0xff]
      %v178 = vld [vmem:[%s165 + $0x38] sm:$0xff]
      %v179 = vadd.f32 %v171, %v172
      %180 = vadd.xlane.f32.xlu0 %v179
      %v181 = vpop.xlane.xlu0 %180
      %v182 = vadd.f32 %v173, %v174
      %183 = vadd.xlane.f32.xlu0 %v182
      %v184 = vpop.xlane.xlu0 %183
      %v185 = vadd.f32 %v175, %v176
      %186 = vadd.xlane.f32.xlu0 %v185
      %v187 = vpop.xlane.xlu0 %186
      %v188 = vadd.f32 %v177, %v178
      %189 = vadd.xlane.f32.xlu0 %v188
      %v190 = vpop.xlane.xlu0 %189
      %v191 = vld [vmem:[%s1] sm:$0xf]
      %v192 = vld [vmem:[%s2] sm:$0xff]
      %v193 = vld [vmem:[%s2 + $0x8] sm:$0xff]
      %v194 = vld [vmem:[%s2 + $0x10] sm:$0xff]
      %v195 = vld [vmem:[%s2 + $0x18] sm:$0xff]
      %197 = vrot.lane.b32.xlu0 %v191, 96
      %v198 = vpop.permute.xlu0 %197
      %vm200 = vcmask 261120
      %v201 = vsel %vm200, %v191, 0
      %203 = vmatprep.subr.mxu0 0.0
      %204 = vmatpush1.msra.mxu0 0.0
      %205 = vmatprep.subr.mxu0 0.0
      %206 = vmatpush1.msra.mxu0 0.0
      %207 = vmatprep.subr.mxu0 0.0
      %208 = vmatpush1.msra.mxu0 0.0
      %209 = vmatprep.subr.mxu0 0.0
      %210 = vmatpush1.msra.mxu0 0.0
      %211 = vmatprep.subr.mxu0 0.0
      %212 = vmatpush1.msra.mxu0 0.0
      %213 = vmatprep.subr.mxu0 0.0
      %214 = vmatpush1.msra.mxu0 0.0
      %215 = vmatprep.subr.mxu0 0.0
      %216 = vmatpush1.msra.mxu0 0.0
      %217 = vmatprep.subr.mxu0 0.0
      %218 = vmatpush1.msra.mxu0 0.0
      %219 = vmatprep.subr.mxu0 0.0
      %220 = vmatpush1.msra.mxu0 0.0
      %221 = vmatprep.subr.mxu0 0.0
      %222 = vmatpush1.msra.mxu0 0.0
      %223 = vmatprep.subr.mxu0 0.0
      %224 = vmatpush1.msra.mxu0 0.0
      %225 = vmatprep.subr.mxu0 0.0
      %226 = vmatpush1.msra.mxu0 0.0
      %227 = vmatprep.subr.mxu0 0.0
      %228 = vmatpush1.msra.mxu0 %v190
      %229 = vmatprep.subr.mxu0 0.0
      %230 = vmatpush1.msra.mxu0 %v187
      %231 = vmatprep.subr.mxu0 0.0
      %232 = vmatpush1.msra.mxu0 %v184
      %233 = vmatprep.subr.mxu0 0.0
      %234 = vmatpush1.msra.mxu0 %v181
      %235 = vmatprep.subr.mxu0 0.0
      %236 = vmatpush2.msra.mxu0 0.0
      %237 = vmatprep.subr.mxu0 0.0
      %238 = vmatpush2.msra.mxu0 0.0
      %239 = vmatprep.subr.mxu0 0.0
      %240 = vmatpush2.msra.mxu0 0.0
      %241 = vmatprep.subr.mxu0 0.0
      %242 = vmatpush2.msra.mxu0 0.0
      %243 = vmatprep.subr.mxu0 0.0
      %244 = vmatpush2.msra.mxu0 0.0
      %245 = vmatprep.subr.mxu0 0.0
      %246 = vmatpush2.msra.mxu0 0.0
      %247 = vmatprep.subr.mxu0 0.0
      %248 = vmatpush2.msra.mxu0 0.0
      %249 = vmatprep.subr.mxu0 0.0
      %250 = vmatpush2.msra.mxu0 0.0
      %251 = vmatprep.subr.mxu0 0.0
      %252 = vmatpush2.msra.mxu0 0.0
      %253 = vmatprep.subr.mxu0 0.0
      %254 = vmatpush2.msra.mxu0 0.0
      %255 = vmatprep.subr.mxu0 0.0
      %256 = vmatpush2.msra.mxu0 0.0
      %257 = vmatprep.subr.mxu0 0.0
      %258 = vmatpush2.msra.mxu0 0.0
      %259 = vmatprep.subr.mxu0 0.0
      %260 = vmatpush2.msra.mxu0 0.0
      %261 = vmatprep.subr.mxu0 0.0
      %262 = vmatpush2.msra.mxu0 0.0
      %263 = vmatprep.subr.mxu0 0.0
      %264 = vmatpush2.msra.mxu0 0.0
      %265 = vmatprep.subr.mxu0 0.0
      %266 = vmatpush2.msra.mxu0 0.0
      %267 = vmatprep.mubr.f32.mxu0 0.0
      %268 = vmatmul.mubr.f32.gmra.mxu0 %v201
      %v269 = vpop.f32.mrf.mxu0
      %v270 = vadd.f32 %v198, %v269
      %v271 = vpop.f32.mrf.mxu0
      %272 = vdwg.mxu0
      %v273 = vmax.f32 %v270, 0.0
      %278 = vrot.lane.b32.xlu0 %v192, 124
      %v279 = vpop.permute.xlu0 %278
      %280 = vrot.lane.b32.xlu0 %v193, 124
      %v281 = vpop.permute.xlu0 %280
      %282 = vrot.lane.b32.xlu0 %v194, 124
      %v283 = vpop.permute.xlu0 %282
      %284 = vrot.lane.b32.xlu0 %v195, 124
      %v285 = vpop.permute.xlu0 %284
      %vm290 = vcmask 31744
      %v291 = vsel %vm290, %v192, 0
      %v293 = vsel %vm290, %v193, 0
      %v295 = vsel %vm290, %v194, 0
      %v297 = vsel %vm290, %v195, 0
      %vm299 = vcmask 1043456
      %v301 = vsel %vm299, %v273, 0
      %303 = vmatprep.subr.mxu0 0.0
      %304 = vmatpush1.msra.mxu0 0.0
      %305 = vmatprep.subr.mxu0 0.0
      %306 = vmatpush1.msra.mxu0 0.0
      %307 = vmatprep.subr.mxu0 0.0
      %308 = vmatpush1.msra.mxu0 0.0
      %309 = vmatprep.subr.mxu0 0.0
      %310 = vmatpush1.msra.mxu0 0.0
      %311 = vmatprep.subr.mxu0 0.0
      %312 = vmatpush1.msra.mxu0 0.0
      %313 = vmatprep.subr.mxu0 0.0
      %314 = vmatpush1.msra.mxu0 0.0
      %315 = vmatprep.subr.mxu0 0.0
      %316 = vmatpush1.msra.mxu0 0.0
      %317 = vmatprep.subr.mxu0 0.0
      %318 = vmatpush1.msra.mxu0 0.0
      %319 = vmatprep.subr.mxu0 0.0
      %320 = vmatpush1.msra.mxu0 0.0
      %321 = vmatprep.subr.mxu0 0.0
      %322 = vmatpush1.msra.mxu0 0.0
      %323 = vmatprep.subr.mxu0 0.0
      %324 = vmatpush1.msra.mxu0 0.0
      %325 = vmatprep.subr.mxu0 0.0
      %326 = vmatpush1.msra.mxu0 0.0
      %327 = vmatprep.subr.mxu0 0.0
      %328 = vmatpush1.msra.mxu0 0.0
      %329 = vmatprep.subr.mxu0 0.0
      %330 = vmatpush1.msra.mxu0 0.0
      %331 = vmatprep.subr.mxu0 0.0
      %332 = vmatpush1.msra.mxu0 0.0
      %333 = vmatprep.subr.mxu0 0.0
      %334 = vmatpush1.msra.mxu0 %v301
      %335 = vmatprep.subr.mxu0 0.0
      %336 = vmatpush2.msra.mxu0 0.0
      %337 = vmatprep.subr.mxu0 0.0
      %338 = vmatpush2.msra.mxu0 0.0
      %339 = vmatprep.subr.mxu0 0.0
      %340 = vmatpush2.msra.mxu0 0.0
      %341 = vmatprep.subr.mxu0 0.0
      %342 = vmatpush2.msra.mxu0 0.0
      %343 = vmatprep.subr.mxu0 0.0
      %344 = vmatpush2.msra.mxu0 0.0
      %345 = vmatprep.subr.mxu0 0.0
      %346 = vmatpush2.msra.mxu0 0.0
      %347 = vmatprep.subr.mxu0 0.0
      %348 = vmatpush2.msra.mxu0 0.0
      %349 = vmatprep.subr.mxu0 0.0
      %350 = vmatpush2.msra.mxu0 0.0
      %351 = vmatprep.subr.mxu0 0.0
      %352 = vmatpush2.msra.mxu0 0.0
      %353 = vmatprep.subr.mxu0 0.0
      %354 = vmatpush2.msra.mxu0 0.0
      %355 = vmatprep.subr.mxu0 0.0
      %356 = vmatpush2.msra.mxu0 0.0
      %357 = vmatprep.subr.mxu0 0.0
      %358 = vmatpush2.msra.mxu0 0.0
      %359 = vmatprep.subr.mxu0 0.0
      %360 = vmatpush2.msra.mxu0 0.0
      %361 = vmatprep.subr.mxu0 0.0
      %362 = vmatpush2.msra.mxu0 0.0
      %363 = vmatprep.subr.mxu0 0.0
      %364 = vmatpush2.msra.mxu0 0.0
      %365 = vmatprep.subr.mxu0 0.0
      %366 = vmatpush2.msra.mxu0 0.0
      %367 = vmatprep.mubr.f32.mxu0 0.0
      %368 = vmatmul.mubr.f32.gmra.mxu0 %v291
      %v369 = vpop.f32.mrf.mxu0
      %v370 = vadd.f32 %v279, %v369
      %v371 = vpop.f32.mrf.mxu0
      %372 = vmatprep.mubr.f32.mxu0 0.0
      %373 = vmatmul.mubr.f32.gmra.mxu0 %v293
      %v374 = vpop.f32.mrf.mxu0
      %v375 = vadd.f32 %v281, %v374
      %v376 = vpop.f32.mrf.mxu0
      %377 = vmatprep.mubr.f32.mxu0 0.0
      %378 = vmatmul.mubr.f32.gmra.mxu0 %v295
      %v379 = vpop.f32.mrf.mxu0
      %v380 = vadd.f32 %v283, %v379
      %v381 = vpop.f32.mrf.mxu0
      %382 = vmatprep.mubr.f32.mxu0 0.0
      %383 = vmatmul.mubr.f32.gmra.mxu0 %v297
      %v384 = vpop.f32.mrf.mxu0
      %v385 = vadd.f32 %v285, %v384
      %v386 = vpop.f32.mrf.mxu0
      %387 = vdwg.mxu0
      %v388 = vxor.u32 %v370, 2147483648
      %v389 = vxor.u32 %v375, 2147483648
      %v390 = vxor.u32 %v380, 2147483648
      %v391 = vxor.u32 %v385, 2147483648
      %v392 = vmul.f32 %v388, 1.442695
      %v393 = vpow.pop %v392
      %v394 = vmul.f32 %v389, 1.442695
      %v395 = vpow.pop %v394
      %v396 = vmul.f32 %v390, 1.442695
      %v397 = vpow.pop %v396
      %v398 = vmul.f32 %v391, 1.442695
      %v399 = vpow.pop %v398
      %v400 = vadd.f32 %v393, 1.0
      %v401 = vadd.f32 %v395, 1.0
      %v402 = vadd.f32 %v397, 1.0
      %v403 = vadd.f32 %v399, 1.0
      %v404 = vrcp.pop %v400
      %v405 = vmul.f32 1.0, %v404
      %v406 = vrcp.pop %v401
      %v407 = vmul.f32 1.0, %v406
      %v408 = vrcp.pop %v402
      %v409 = vmul.f32 1.0, %v408
      %v410 = vrcp.pop %v403
      %v411 = vmul.f32 1.0, %v410
      %413 = vset.pattern.permute.xlu0 0
      %414 = vperm.xlu0 %413, %v405
      %v415 = vpop.permute.xlu0 %414
      %418 = vset.pattern.permute.xlu0 0
      %419 = vperm.xlu0 %418, %v407
      %v420 = vpop.permute.xlu0 %419
      %423 = vset.pattern.permute.xlu0 0
      %424 = vperm.xlu0 %423, %v409
      %v425 = vpop.permute.xlu0 %424
      %428 = vset.pattern.permute.xlu0 0
      %429 = vperm.xlu0 %428, %v411
      %v430 = vpop.permute.xlu0 %429
      %v432 = vmul.f32 %v171, %v415
      %v433 = vmul.f32 %v172, %v415
      %v434 = vmul.f32 %v173, %v420
      %v435 = vmul.f32 %v174, %v420
      %v436 = vmul.f32 %v175, %v425
      %v437 = vmul.f32 %v176, %v425
      %v438 = vmul.f32 %v177, %v430
      %v439 = vmul.f32 %v178, %v430
      %440 = vst [vmem:[%s170] sm:$0xff] %v432
      %441 = vst [vmem:[%s170 + $0x8] sm:$0xff] %v433
      %442 = vst [vmem:[%s170 + $0x10] sm:$0xff] %v434
      %443 = vst [vmem:[%s170 + $0x18] sm:$0xff] %v435
      %444 = vst [vmem:[%s170 + $0x20] sm:$0xff] %v436
      %445 = vst [vmem:[%s170 + $0x28] sm:$0xff] %v437
      %446 = vst [vmem:[%s170 + $0x30] sm:$0xff] %v438
      %447 = vst [vmem:[%s170 + $0x38] sm:$0xff] %v439
      %p448 = scmp.lt.s32.totalorder %s14, 1
      %s449 = scalar_select %p448, %s14, 1
      %s450 = smul.addr %s449, 8
      %s451 = smul.addr %s450, 8
      %s452 = scalar_lea.vmem %s3, %s451
      // Predicated region
      $region33: #{channel_attention.1} parent=31 // pred_check
        %p453 = pneg %p100
      $region34: #{channel_attention.1} parent=31 // pred_check_branch
        %455 = sbr.rel (%p453) target = $region36
      $region35: #{channel_attention.1} parent=31 // pred_region
        _
      $region36: #{channel_attention.1} parent=31 // pred_fallthru
        _
    $region32: #{channel_attention.1} parent=5 // pred_fallthru
      _
    %p456 = scmp.le.s32.totalorder 2, %s9
    // Predicated region
    $region37: #{channel_attention.1} parent=5 // pred_check
      %p457 = pneg %p456
    $region38: #{channel_attention.1} parent=5 // pred_check_branch
      %459 = sbr.rel (%p457) target = $region40
    $region39: #{channel_attention.1} parent=5 // pred_region
      %s460 = ssub.s32 %s9, 2
      // Predicated region
      $region41: #{channel_attention.1} parent=39 // pred_check
        %p461 = pneg %p106
      $region42: #{channel_attention.1} parent=39 // pred_check_branch
        %463 = sbr.rel (%p461) target = $region44
      $region43: #{channel_attention.1} parent=39 // pred_region
        %p464 = scmp.lt.s32.totalorder %s15, 1
        %s465 = scalar_select %p464, %s15, 1
        %s466 = smul.addr %s465, 8
        %s467 = smul.addr %s466, 8
        %s468 = scalar_lea.vmem %s3, %s467
      $region44: #{channel_attention.1} parent=39 // pred_fallthru
        _
    $region40: #{channel_attention.1} parent=5 // pred_fallthru
      _
  $region6: #{channel_attention.1} parent=0 // loop_footer
    %s13 = sadd.s32 1, %s9
  $region7: #{channel_attention.1} parent=0 // loop_footer_branch
    %8 = sbr.rel target = $region3
  $region8: #{channel_attention.1} parent=0 // loop_exit
    _

</llo_original>
